<compile_context>
chip_gen: v7x
topology: tpu7x:2x2x1
jax: 0.10.0
libtpu: 0.0.40
codegen_flags: <defaults>
</compile_context>

<pallas_src>
import functools

import jax
import jax.numpy as jnp
from jax.experimental import pallas as pl
from jax.experimental.pallas import tpu as pltpu

_MIN_PALLAS_BYTES = 1 << 20    # below this, plain jnp is as fast or faster
_MULTI_STEP_BYTES = 2 << 20    # above this, force >=2 grid steps (v7x: 2 TCs)


def _poly_cutoff_kernel(x_ref, o_ref, *, inv_r_max: float, r_max: float, p: int):
    """env = 1 - c0*u^p + c1*u^(p+1) - c2*u^(p+2), u = x/r_max, masked by x<r_max."""
    x = x_ref[...].astype(jnp.float32)
    u = x * inv_r_max                    # scalar reciprocal folded at trace time

    # u^p via square-and-multiply (p >= 1 guaranteed by the wrapper).
    base, e, u_p = u, p, None
    while e > 0:
        if e & 1:
            u_p = base if u_p is None else u_p * base
        e >>= 1
        if e:
            base = base * base

    pf = float(p)
    c0 = (pf + 1.0) * (pf + 2.0) / 2.0
    c1 = pf * (pf + 2.0)
    c2 = pf * (pf + 1.0) / 2.0

    # Horner: 1 - c0*u^p + c1*u^(p+1) - c2*u^(p+2) = 1 + u^p * (-c0 + u*(c1 - c2*u))
    env = 1.0 + u_p * (-c0 + u * (c1 - c2 * u))
    # TODO(synk): optional bf16-native compute on v6e/v7x would halve VALU work for
    # bf16 I/O; kept in f32 for v5e compatibility and u^(p+2) precision near u~1.
    o_ref[...] = jnp.where(x < r_max, env, 0.0).astype(o_ref.dtype)


def _envelope_jnp(x, r_max, p):
    """Plain-jnp path (small inputs / sub-tile remainder).  Same math as the kernel."""
    xf = x.astype(jnp.float32)
    u = xf * (1.0 / float(r_max))
    pf = float(p)
    c0 = (pf + 1.0) * (pf + 2.0) / 2.0
    c1 = pf * (pf + 2.0)
    c2 = pf * (pf + 1.0) / 2.0
    u_p = u ** int(p)
    env = 1.0 + u_p * (-c0 + u * (c1 - c2 * u))
    return jnp.where(xf < float(r_max), env, 0.0).astype(x.dtype)


def _budgets():
    """(max block bytes, vmem_limit_bytes), TPU-generation aware."""
    try:
        vmem_cap = int(pltpu.get_tpu_info().vmem_capacity_bytes)
    except Exception:                               # unknown / API change -> conservative
        vmem_cap = 64 * 1024 * 1024
    if vmem_cap >= 100 * 1024 * 1024:               # v5e / v6e: 128 MiB physical VMEM
        return 16 * 1024 * 1024, 64 * 1024 * 1024
    return 8 * 1024 * 1024, 48 * 1024 * 1024        # v7x: 64 MiB physical VMEM


def _pick_tile_m(n_rows: int, n_cols: int, itemsize: int, block_cap_bytes: int) -> int:
    """Largest multiple-of-floor row tile that fits the block byte budget; forces
    >=2 grid steps for slabs >= _MULTI_STEP_BYTES so both v7x TCs get work."""
    floor = 8 if itemsize >= 4 else (16 if itemsize == 2 else 32)
    if n_rows <= floor:
        return n_rows                               # full-extent block (allowed)
    max_by_bytes = max(floor, block_cap_bytes // (n_cols * itemsize))
    row_cap = n_rows
    if n_rows * n_cols * itemsize >= _MULTI_STEP_BYTES:
        row_cap = max(floor, -(-n_rows // 2))       # cdiv -> at least 2 grid steps
    tile_m = min(max_by_bytes, row_cap, n_rows)
    return max(floor, (tile_m // floor) * floor)


def polynomial_cutoff(x: jax.Array, r_max: float, p: int = 6, *,
                      force_pallas: bool = False) -> jax.Array:
    """PolynomialCutoff.forward: envelope applied elementwise to x (any shape)."""
    if p < 1:
        raise ValueError("PolynomialCutoff requires p >= 1")

    orig_shape = x.shape
    dtype = x.dtype
    itemsize = jnp.dtype(dtype).itemsize
    n_elem = x.size

    if n_elem == 0:
        return jnp.zeros(orig_shape, dtype)
    if not force_pallas and n_elem * itemsize < _MIN_PALLAS_BYTES:
        return _envelope_jnp(x, r_max, p)           # dispatch overhead would dominate

    flat = x.reshape(-1)                            # metadata-only for contiguous x

    # Split off the <128-element remainder (handled with jnp); the main part needs
    # NO padding pass and reshapes into a lane-dense slab for free.
    rem = n_elem % 128
    n_main = n_elem - rem
    if n_main == 0:
        return _envelope_jnp(x, r_max, p)
    main = flat[:n_main] if rem else flat

    # Lane-dense layout: largest column count that divides n_main, preferring >=8 rows.
    n_cols = 128
    for cols in (2048, 1024, 512, 256):
        if n_main % cols == 0 and n_main // cols >= 8:
            n_cols = cols
            break
    n_rows = n_main // n_cols
    slab = main.reshape(n_rows, n_cols)

    block_cap, vmem_limit = _budgets()
    tile_m = _pick_tile_m(n_rows, n_cols, itemsize, block_cap)
    grid = (pl.cdiv(n_rows, tile_m),)               # masked edge block if not divisible

    kernel = functools.partial(
        _poly_cutoff_kernel,
        inv_r_max=1.0 / float(r_max),
        r_max=float(r_max),
        p=int(p),
    )

    out_main = pl.pallas_call(
        kernel,
        out_shape=jax.ShapeDtypeStruct((n_rows, n_cols), dtype),
        grid=grid,
        in_specs=[pl.BlockSpec((tile_m, n_cols), lambda i: (i, 0))],
        out_specs=pl.BlockSpec((tile_m, n_cols), lambda i: (i, 0)),
        compiler_params=pltpu.CompilerParams(
            dimension_semantics=("parallel",),
            vmem_limit_bytes=vmem_limit,
        ),
    )(slab)

    out_flat = out_main.reshape(-1)
    if rem:
        out_flat = jnp.concatenate([out_flat, _envelope_jnp(flat[n_main:], r_max, p)])
    return out_flat.reshape(orig_shape)


def _reference(x, r_max, p):
    xf = x.astype(jnp.float32)
    u = xf / float(r_max)
    env = (1.0
           - (p + 1.0) * (p + 2.0) / 2.0 * jnp.power(u, p)
           + p * (p + 2.0) * jnp.power(u, p + 1)
           - p * (p + 1.0) / 2.0 * jnp.power(u, p + 2))
    return env * (xf < float(r_max)).astype(env.dtype)


if __name__ == "__main__":
    key = jax.random.PRNGKey(0)
    k1, k2, k3, k4 = jax.random.split(key, 4)
    r_max, p = 5.0, 6

    # (1) Module-sized input (2,4,16,16), forced through the Pallas path.
    x = jax.random.uniform(k1, (2, 4, 16, 16), dtype=jnp.float32) * (1.5 * r_max)
    out = jax.block_until_ready(polynomial_cutoff(x, r_max=r_max, p=p, force_pallas=True))
    assert out.shape == x.shape and out.dtype == x.dtype
    assert jnp.allclose(out, _reference(x, r_max, p), atol=1e-5, rtol=1e-5), "small f32 mismatch"

    # (2) Same small input via the default jnp bypass (<1 MiB).
    out_bypass = jax.block_until_ready(polynomial_cutoff(x, r_max=r_max, p=p))
    assert jnp.allclose(out_bypass, _reference(x, r_max, p), atol=1e-5, rtol=1e-5), "bypass mismatch"

    # (3) Multi-block f32 slab (divisible by 128 -> zero-copy path, >=2 grid steps).
    x_big = jax.random.uniform(k2, (8, 512, 280), dtype=jnp.float32) * (1.5 * r_max)
    out_big = jax.block_until_ready(polynomial_cutoff(x_big, r_max=r_max, p=p))
    assert jnp.allclose(out_big, _reference(x_big, r_max, p), atol=1e-5, rtol=1e-5), "big f32 mismatch"

    # (4) Ragged element count (not a multiple of 128) -> split/stitch path.
    x_rag = jax.random.uniform(k3, (641, 1923), dtype=jnp.float32) * (1.5 * r_max)
    out_rag = jax.block_until_ready(polynomial_cutoff(x_rag, r_max=r_max, p=p))
    assert jnp.allclose(out_rag, _reference(x_rag, r_max, p), atol=1e-5, rtol=1e-5), "ragged mismatch"

    # (5) bf16 I/O (compute in f32 inside the kernel, store bf16).
    x_bf16 = (jax.random.uniform(k4, (1024, 768), dtype=jnp.float32) * (1.5 * r_max)
              ).astype(jnp.bfloat16)
    out_bf16 = jax.block_until_ready(polynomial_cutoff(x_bf16, r_max=r_max, p=p))
    assert out_bf16.dtype == jnp.bfloat16
    assert jnp.allclose(out_bf16.astype(jnp.float32), _reference(x_bf16, r_max, p),
                        atol=2e-2, rtol=2e-2), "bf16 mismatch"

    print("KERNEL_OK")
</pallas_src>

<mosaic_0001>
module attributes {stable_mosaic.version = 11 : i64} {
  func.func @_poly_cutoff_kernel(%arg0: i32, %arg1: memref<8x256xf32, #tpu.memory_space<vmem>>, %arg2: memref<8x256xf32, #tpu.memory_space<vmem>>) attributes {dimension_semantics = [#tpu.dimension_semantics<parallel>], iteration_bounds = array<i64: 1>, scalar_prefetch = 0 : i64, scratch_operands = 0 : i64, tpu.core_type = #tpu.core_type<tc>, window_params = [{transform_indices = @transform_0, window_bounds = array<i64: 8, 256>}, {transform_indices = @transform_1, window_bounds = array<i64: 8, 256>}]} {
    %c0 = arith.constant 0 : index
    %c0_0 = arith.constant 0 : index
    %0 = vector.load %arg1[%c0, %c0_0] : memref<8x256xf32, #tpu.memory_space<vmem>>, vector<8x256xf32>
    %cst = arith.constant 2.000000e-01 : f32
    %1 = vector.broadcast %cst : f32 to vector<8x256xf32>
    %2 = arith.mulf %0, %1 : vector<8x256xf32>
    %3 = arith.mulf %2, %2 : vector<8x256xf32>
    %4 = arith.mulf %3, %3 : vector<8x256xf32>
    %5 = arith.mulf %3, %4 : vector<8x256xf32>
    %cst_1 = arith.constant 2.100000e+01 : f32
    %6 = vector.broadcast %cst_1 : f32 to vector<8x256xf32>
    %7 = arith.mulf %6, %2 : vector<8x256xf32>
    %cst_2 = arith.constant 4.800000e+01 : f32
    %8 = vector.broadcast %cst_2 : f32 to vector<8x256xf32>
    %9 = arith.subf %8, %7 : vector<8x256xf32>
    %10 = arith.mulf %2, %9 : vector<8x256xf32>
    %cst_3 = arith.constant -2.800000e+01 : f32
    %11 = vector.broadcast %cst_3 : f32 to vector<8x256xf32>
    %12 = arith.addf %11, %10 : vector<8x256xf32>
    %13 = arith.mulf %5, %12 : vector<8x256xf32>
    %cst_4 = arith.constant 1.000000e+00 : f32
    %14 = vector.broadcast %cst_4 : f32 to vector<8x256xf32>
    %15 = arith.addf %14, %13 : vector<8x256xf32>
    %cst_5 = arith.constant 5.000000e+00 : f32
    %16 = vector.broadcast %cst_5 : f32 to vector<8x256xf32>
    %17 = arith.cmpf olt, %0, %16 : vector<8x256xf32>
    %cst_6 = arith.constant 0.000000e+00 : f32
    %18 = vector.broadcast %cst_6 : f32 to vector<8x256xf32>
    %19 = arith.select %17, %15, %18 : vector<8x256xi1>, vector<8x256xf32>
    %c0_7 = arith.constant 0 : index
    %c0_8 = arith.constant 0 : index
    %20 = vector.load %arg2[%c0_7, %c0_8] : memref<8x256xf32, #tpu.memory_space<vmem>>, vector<8x256xf32>
    tpu.vector_store %arg2[%c0_7, %c0_8], %19 {strides = array<i32>} : memref<8x256xf32, #tpu.memory_space<vmem>>, vector<8x256xf32>,
    return
  }
  func.func @transform_0(%arg0: i32) -> (i32, i32) {
    %c0_i32 = arith.constant 0 : i32
    %c0_i32_0 = arith.constant 0 : i32
    return %arg0, %c0_i32 : i32, i32
  }
  func.func @transform_1(%arg0: i32) -> (i32, i32) {
    %c0_i32 = arith.constant 0 : i32
    %c0_i32_0 = arith.constant 0 : i32
    return %arg0, %c0_i32 : i32, i32
  }
}

</mosaic_0001>

<llo_original>
// kernel: tpu_custom_call.1
$region0: #{tpu_custom_call.1}
  #allocation0 [shape = 'u32[]', space=smem, size = 0x4, offset = 0x4, fixed_abs, tag = 'smem constant byte address 0x4 - core index']
  #allocation1 [shape = 'u32[144,128]{1,0:T(1,128)}', space=vmem, size = 0x12000, scoped, tag = 'internal scratch']
  %s0 = inlined_call_operand.hbm [shape: f32[8,256], index: 0, kind: input, shape index: {}]
  %s1 = inlined_call_operand.hbm [shape: f32[8,256], index: 1, kind: output, shape index: {}]
  %s2 = sld [smem:[#allocation0]]
  $region18: #{tpu_custom_call.1} parent=0
    _
  %s4 = ssub.s32 1, %s2
  %s5 = scalar_select 0, %s4, %s2
  $region1: #{tpu_custom_call.1} parent=0
    #allocation2 [shape = 'u8[8192]{0}', space=vmem, size = 0x2000, scoped, tag = 'input window, operand 0, single buffered']
    #allocation3 [shape = 's32[1]{0}', space=sflag, size = 0x4, scoped, tag = 'scoped memory for tpu_custom_call.1']
    #allocation4 [shape = 's32[1]{0}', space=sflag, size = 0x4, scoped, tag = 'scoped memory for tpu_custom_call.1']
    #allocation5 [shape = 'u8[8192]{0}', space=vmem, size = 0x2000, scoped, tag = 'output window, operand 0, single buffered']
    %6 = vsyncpa [#allocation3], 0
    %7 = vsyncpa [#allocation4], 0
    // Predicated region
    $region2: #{tpu_custom_call.1} parent=1 // pred_check
      _
    $region3: #{tpu_custom_call.1} parent=1 // pred_check_branch
      %9 = sbr.rel (0) target = $region5
    $region4: #{tpu_custom_call.1} parent=1 // pred_region
      %s11 = ssub.s32 256, 256
      %12 = vsyncadd [#allocation3], %s11
      %s14 = sshll.u32 [#allocation2], 4
      %s15 = int_to_ptr.vmem [resolvable:$true] %s14
      %17 = dma.hbm_to_vmem [thread:$0]  %s0, 256, %s15, [#allocation3]
    $region5: #{tpu_custom_call.1} parent=1 // pred_fallthru
      _
    // Predicated region
    $region6: #{tpu_custom_call.1} parent=1 // pred_check
      _
    $region7: #{tpu_custom_call.1} parent=1 // pred_check_branch
      %19 = sbr.rel (0) target = $region9
    $region8: #{tpu_custom_call.1} parent=1 // pred_region
      %20 = dma.done [#allocation3], 256
    $region9: #{tpu_custom_call.1} parent=1 // pred_fallthru
      _
    %v21 = vld [vmem:[#allocation2] sm:$0xff]
    %v22 = vld [vmem:[#allocation2 + $0x8] sm:$0xff]
    %v23 = vmul.f32 %v21, 0.2
    %v24 = vmul.f32 %v22, 0.2
    %v25 = vmul.f32 %v23, %v23
    %v26 = vmul.f32 %v24, %v24
    %v27 = vmul.f32 %v25, %v25
    %v28 = vmul.f32 %v26, %v26
    %v29 = vmul.f32 %v25, %v27
    %v30 = vmul.f32 %v26, %v28
    %v31 = vmul.f32 %v23, 21.0
    %v32 = vmul.f32 %v24, 21.0
    %v33 = vsub.f32 48.0, %v31
    %v34 = vsub.f32 48.0, %v32
    %v35 = vmul.f32 %v23, %v33
    %v36 = vmul.f32 %v24, %v34
    %v37 = vadd.f32 %v35, -28.0
    %v38 = vadd.f32 %v36, -28.0
    %v39 = vmul.f32 %v29, %v37
    %v40 = vmul.f32 %v30, %v38
    %v41 = vadd.f32 %v39, 1.0
    %v42 = vadd.f32 %v40, 1.0
    %vm43 = vcmp.lt.f32.partialorder %v21, 5.0
    %vm44 = vcmp.lt.f32.partialorder %v22, 5.0
    %v45 = vsel %vm43, %v41, 0.0
    %v46 = vsel %vm44, %v42, 0.0
    %47 = vst [vmem:[#allocation5] sm:$0xff] %v45
    %48 = vst [vmem:[#allocation5 + $0x8] sm:$0xff] %v46
    // Predicated region
    $region10: #{tpu_custom_call.1} parent=1 // pred_check
      _
    $region11: #{tpu_custom_call.1} parent=1 // pred_check_branch
      %50 = sbr.rel (0) target = $region13
    $region12: #{tpu_custom_call.1} parent=1 // pred_region
      %s52 = ssub.s32 256, 256
      %53 = vsyncadd [#allocation4], %s52
      %s55 = sshll.u32 [#allocation5], 4
      %s56 = int_to_ptr.vmem [resolvable:$true] %s55
      %58 = dma.vmem_to_hbm [thread:$0]  %s56, 256, %s1, [#allocation4]
    $region13: #{tpu_custom_call.1} parent=1 // pred_fallthru
      _
    // Predicated region
    $region14: #{tpu_custom_call.1} parent=1 // pred_check
      _
    $region15: #{tpu_custom_call.1} parent=1 // pred_check_branch
      %60 = sbr.rel (0) target = $region17
    $region16: #{tpu_custom_call.1} parent=1 // pred_region
      %61 = dma.done [#allocation4], 256
    $region17: #{tpu_custom_call.1} parent=1 // pred_fallthru
      _
    %62 = vsyncpa [#allocation3], 1
    %63 = vsyncpa [#allocation4], 1

</llo_original>
